<compile_context>
chip_gen: v7x
topology: tpu7x:2x2x1
jax: 0.10.0
libtpu: 0.0.40
codegen_flags: <defaults>
</compile_context>

<pallas_src>
import jax
import jax.numpy as jnp
from jax.experimental import pallas as pl
from jax.experimental.pallas import tpu as pltpu


def _rbf_kernel(gamma_ref, n1_ref, n2_ref, x1_ref, x2t_ref, out_ref):
    # gamma_ref : SMEM (1,)                scalar parameter
    # n1_ref    : VMEM (block_n, 1)        ||x1||^2 for this row tile
    # n2_ref    : VMEM (1, block_m)        ||x2||^2 for this column tile
    # x1_ref    : VMEM (block_n, block_k)  x1 row tile / feature chunk
    # x2t_ref   : VMEM (block_k, block_m)  x2^T feature chunk / column tile
    # out_ref   : VMEM (block_n, block_m)  f32 Gram tile, doubles as the
    #                                      cross-term accumulator (its block
    #                                      index is constant along k).
    k = pl.program_id(2)

    @pl.when(k == 0)
    def _():
        out_ref[...] = jnp.zeros_like(out_ref)

    # Inner loop is pure MXU work.
    out_ref[...] += jnp.dot(
        x1_ref[...], x2t_ref[...], preferred_element_type=jnp.float32
    )

    @pl.when(k == pl.num_programs(2) - 1)
    def _():
        # dist = ||x1||^2 + ||x2||^2 - 2 * <x1, x2>; clamp against the tiny
        # negative values cancellation can produce, then exponentiate.
        dist = n1_ref[...] + n2_ref[...] - 2.0 * out_ref[...]
        dist = jnp.maximum(dist, 0.0)
        out_ref[...] = jnp.exp(-gamma_ref[0] * dist)


def _round_up(x, m):
    return ((x + m - 1) // m) * m


def _choose_block(dim, candidates):
    """Pick the candidate block size minimizing padded size (tie: larger block)."""
    best_pad, best_blk = None, None
    for c in candidates:
        pad = _round_up(dim, c)
        if best_pad is None or pad < best_pad or (pad == best_pad and c > best_blk):
            best_pad, best_blk = pad, c
    return best_blk, best_pad


def rbf_kernel(x1, x2, gamma, *, block_n=None, block_m=None, block_k=None):
    """Pallas RBF kernel. x1: (N, D), x2: (M, D), gamma: scalar -> (N, M) f32."""
    N, D = x1.shape
    M, D2 = x2.shape
    assert D == D2, "feature dims must match"

    x1 = x1.astype(jnp.float32)
    x2 = x2.astype(jnp.float32)

    # ---- tile-size selection -------------------------------------------
    # Rows: multiple of 8 (sublanes); cols: multiple of 128 (lane-dense out);
    # K: multiple of 128.  Candidates up to 512 keep live VMEM (~6-8 MiB with
    # double buffering) comfortably under every generation's scoped default
    # (16 MiB on v5e) while minimizing padding waste.
    if block_n is None:
        n_cands = [512, 384, 256, 128]
        rn8 = _round_up(N, 8)
        if rn8 <= 512:
            n_cands.append(rn8)
        block_n, n_pad = _choose_block(N, n_cands)
    else:
        n_pad = _round_up(N, block_n)

    if block_m is None:
        block_m, m_pad = _choose_block(M, [512, 384, 256, 128])
    else:
        m_pad = _round_up(M, block_m)

    if block_k is None:
        rd128 = _round_up(D, 128)
        if rd128 <= 512:
            block_k, d_pad = rd128, rd128          # single K step, zero waste
        else:
            block_k, d_pad = _choose_block(D, [512, 384, 256, 128])
    else:
        d_pad = _round_up(D, block_k)

    # If the parallel (i, j) grid collapses to a single tile, split the row
    # block so v7x's two TensorCores both get work (no-op effect elsewhere).
    if (n_pad // block_n) * (m_pad // block_m) == 1:
        if block_n >= 256 and block_n % 16 == 0:
            block_n //= 2
        elif block_m >= 256 and block_m % 256 == 0:
            block_m //= 2

    # ---- wrapper-side prep (pad only if needed, fuse transpose with pad) --
    if (n_pad, d_pad) == (N, D):
        x1_p = x1
    else:
        x1_p = jnp.zeros((n_pad, d_pad), jnp.float32).at[:N, :D].set(x1)

    if (d_pad, m_pad) == (D, M):
        x2t_p = x2.T
    else:
        x2t_p = jnp.zeros((d_pad, m_pad), jnp.float32).at[:D, :M].set(x2.T)

    # Squared norms hoisted out of the kernel's K loop (padded rows/cols -> 0,
    # which only affects entries that get sliced away below).
    n1 = jnp.sum(x1 * x1, axis=1)                                     # (N,)
    n2 = jnp.sum(x2 * x2, axis=1)                                     # (M,)
    n1_p = jnp.zeros((n_pad, 1), jnp.float32).at[:N, 0].set(n1)
    n2_p = jnp.zeros((1, m_pad), jnp.float32).at[0, :M].set(n2)

    gamma_arr = jnp.asarray(gamma, dtype=jnp.float32).reshape((1,))

    grid = (n_pad // block_n, m_pad // block_m, d_pad // block_k)

    # Bytes reflect actual tiling re-reads: x1 is re-read per column tile,
    # x2^T per row tile; output is written once.
    cost = pl.CostEstimate(
        flops=2 * n_pad * m_pad * d_pad + 5 * n_pad * m_pad,
        transcendentals=n_pad * m_pad,
        bytes_accessed=4 * (
            n_pad * d_pad * (m_pad // block_m)
            + d_pad * m_pad * (n_pad // block_n)
            + n_pad * m_pad
            + n_pad + m_pad
        ),
    )

    out_pad = pl.pallas_call(
        _rbf_kernel,
        out_shape=jax.ShapeDtypeStruct((n_pad, m_pad), jnp.float32),
        grid=grid,
        in_specs=[
            # gamma: tiny scalar parameter, lives in SMEM.
            pl.BlockSpec(memory_space=pltpu.MemorySpace.SMEM),
            # ||x1||^2 per row tile (constant in j, k -> fetched once per i).
            pl.BlockSpec((block_n, 1), lambda i, j, k: (i, 0)),
            # ||x2||^2 per column tile (constant in i, k).
            pl.BlockSpec((1, block_m), lambda i, j, k: (0, j)),
            # x1 row tile x feature chunk.
            pl.BlockSpec((block_n, block_k), lambda i, j, k: (i, k)),
            # x2^T feature chunk x column tile.
            pl.BlockSpec((block_k, block_m), lambda i, j, k: (k, j)),
        ],
        # Output block index constant along k -> VMEM-resident accumulator.
        out_specs=pl.BlockSpec((block_n, block_m), lambda i, j, k: (i, j)),
        compiler_params=pltpu.CompilerParams(
            dimension_semantics=("parallel", "parallel", "arbitrary"),
        ),
        cost_estimate=cost,
    )(gamma_arr, n1_p, n2_p, x1_p, x2t_p)

    if (n_pad, m_pad) == (N, M):
        return out_pad
    return out_pad[:N, :M]


if __name__ == "__main__":
    key = jax.random.PRNGKey(0)
    k1, k2 = jax.random.split(key)

    # Small shapes consistent with the module: two batches of feature vectors.
    N, M, D = 16, 8, 32
    x1 = jax.random.normal(k1, (N, D), dtype=jnp.float32)
    # Make x2 close to some x1 rows so the kernel produces non-trivial values.
    x2 = x1[:M] + 0.1 * jax.random.normal(k2, (M, D), dtype=jnp.float32)

    # Deterministic parameter init, matching nn.Parameter(torch.tensor(1.0)).
    gamma = jnp.float32(1.0)

    out = rbf_kernel(x1, x2, gamma)
    out = jax.block_until_ready(out)

    # Pure-JAX reference (literal PyTorch semantics).
    ref = jnp.exp(
        -gamma * jnp.sum((x1[:, None, :] - x2[None, :, :]) ** 2, axis=-1)
    )
    assert out.shape == (N, M)
    assert out.dtype == jnp.float32
    assert jnp.allclose(out, ref, atol=1e-4, rtol=1e-4), (
        float(jnp.max(jnp.abs(out - ref)))
    )

    print("KERNEL_OK")
</pallas_src>

<mosaic_0001>
module attributes {stable_mosaic.version = 11 : i64} {
  func.func @_rbf_kernel(%arg0: i32, %arg1: i32, %arg2: i32, %arg3: memref<1xf32, #tpu.memory_space<smem>>, %arg4: memref<16x1xf32, #tpu.memory_space<vmem>>, %arg5: memref<1x128xf32, #tpu.memory_space<vmem>>, %arg6: memref<16x128xf32, #tpu.memory_space<vmem>>, %arg7: memref<128x128xf32, #tpu.memory_space<vmem>>, %arg8: memref<16x128xf32, #tpu.memory_space<vmem>>) attributes {dimension_semantics = [#tpu.dimension_semantics<parallel>, #tpu.dimension_semantics<parallel>, #tpu.dimension_semantics<arbitrary>], iteration_bounds = array<i64: 1, 1, 1>, scalar_prefetch = 0 : i64, scratch_operands = 0 : i64, tpu.core_type = #tpu.core_type<tc>, window_params = [{transform_indices = @transform_0, window_bounds = array<i64: 1>}, {transform_indices = @transform_1, window_bounds = array<i64: 16, 1>}, {transform_indices = @transform_2, window_bounds = array<i64: 1, 128>}, {transform_indices = @transform_3, window_bounds = array<i64: 16, 128>}, {transform_indices = @transform_4, window_bounds = array<i64: 128, 128>}, {transform_indices = @transform_5, window_bounds = array<i64: 16, 128>}]} {
    %c0_i32 = arith.constant 0 : i32
    %0 = arith.cmpi eq, %arg2, %c0_i32 : i32
    %1 = arith.extui %0 : i1 to i32
    %c0_i32_0 = arith.constant 0 : i32
    %2 = arith.cmpi ne, %1, %c0_i32_0 : i32
    scf.if %2 {
      %cst_10 = arith.constant 0.000000e+00 : f32
      %12 = vector.broadcast %cst_10 : f32 to vector<16x128xf32>
      %c0_11 = arith.constant 0 : index
      %c0_12 = arith.constant 0 : index
      %13 = vector.load %arg8[%c0_11, %c0_12] : memref<16x128xf32, #tpu.memory_space<vmem>>, vector<16x128xf32>
      tpu.vector_store %arg8[%c0_11, %c0_12], %12 {strides = array<i32>} : memref<16x128xf32, #tpu.memory_space<vmem>>, vector<16x128xf32>,
    } else {
    }
    %c0 = arith.constant 0 : index
    %c0_1 = arith.constant 0 : index
    %3 = vector.load %arg8[%c0, %c0_1] : memref<16x128xf32, #tpu.memory_space<vmem>>, vector<16x128xf32>
    %c0_2 = arith.constant 0 : index
    %c0_3 = arith.constant 0 : index
    %4 = vector.load %arg6[%c0_2, %c0_3] : memref<16x128xf32, #tpu.memory_space<vmem>>, vector<16x128xf32>
    %c0_4 = arith.constant 0 : index
    %c0_5 = arith.constant 0 : index
    %5 = vector.load %arg7[%c0_4, %c0_5] : memref<128x128xf32, #tpu.memory_space<vmem>>, vector<128x128xf32>
    %cst = arith.constant dense<0.000000e+00> : vector<16x128xf32>
    %6 = tpu.matmul %4, %5, %cst {dimension_numbers = #tpu.dot_dimension_numbers<[1], [0], [0], [1], [0, 0, 1, 1], [], []>} : vector<16x128xf32>, vector<128x128xf32>, vector<16x128xf32> -> vector<16x128xf32>
    %7 = arith.addf %3, %6 : vector<16x128xf32>
    %c0_6 = arith.constant 0 : index
    %c0_7 = arith.constant 0 : index
    %8 = vector.load %arg8[%c0_6, %c0_7] : memref<16x128xf32, #tpu.memory_space<vmem>>, vector<16x128xf32>
    tpu.vector_store %arg8[%c0_6, %c0_7], %7 {strides = array<i32>} : memref<16x128xf32, #tpu.memory_space<vmem>>, vector<16x128xf32>,
    %c0_i32_8 = arith.constant 0 : i32
    %9 = arith.cmpi eq, %arg2, %c0_i32_8 : i32
    %10 = arith.extui %9 : i1 to i32
    %c0_i32_9 = arith.constant 0 : i32
    %11 = arith.cmpi ne, %10, %c0_i32_9 : i32
    scf.if %11 {
      %c0_10 = arith.constant 0 : index
      %c0_11 = arith.constant 0 : index
      %12 = vector.load %arg4[%c0_10, %c0_11] : memref<16x1xf32, #tpu.memory_space<vmem>>, vector<16x1xf32>
      %c0_12 = arith.constant 0 : index
      %c0_13 = arith.constant 0 : index
      %13 = vector.load %arg5[%c0_12, %c0_13] : memref<1x128xf32, #tpu.memory_space<vmem>>, vector<1x128xf32>
      %14 = vector.broadcast %12 : vector<16x1xf32> to vector<16x128xf32>
      %15 = vector.broadcast %13 : vector<1x128xf32> to vector<16x128xf32>
      %16 = arith.addf %14, %15 : vector<16x128xf32>
      %c0_14 = arith.constant 0 : index
      %c0_15 = arith.constant 0 : index
      %17 = vector.load %arg8[%c0_14, %c0_15] : memref<16x128xf32, #tpu.memory_space<vmem>>, vector<16x128xf32>
      %cst_16 = arith.constant 2.000000e+00 : f32
      %18 = vector.broadcast %cst_16 : f32 to vector<16x128xf32>
      %19 = arith.mulf %18, %17 : vector<16x128xf32>
      %20 = arith.subf %16, %19 : vector<16x128xf32>
      %cst_17 = arith.constant 0.000000e+00 : f32
      %21 = vector.broadcast %cst_17 : f32 to vector<16x128xf32>
      %22 = arith.maximumf %20, %21 : vector<16x128xf32>
      %c0_18 = arith.constant 0 : index
      %23 = memref.load %arg3[%c0_18] : memref<1xf32, #tpu.memory_space<smem>>
      %cst_19 = arith.constant 0.000000e+00 : f32
      %24 = arith.subf %cst_19, %23 : f32
      %25 = vector.broadcast %24 : f32 to vector<16x128xf32>
      %26 = arith.mulf %25, %22 : vector<16x128xf32>
      %27 = math.exp %26 : vector<16x128xf32>
      %c0_20 = arith.constant 0 : index
      %c0_21 = arith.constant 0 : index
      %28 = vector.load %arg8[%c0_20, %c0_21] : memref<16x128xf32, #tpu.memory_space<vmem>>, vector<16x128xf32>
      tpu.vector_store %arg8[%c0_20, %c0_21], %27 {strides = array<i32>} : memref<16x128xf32, #tpu.memory_space<vmem>>, vector<16x128xf32>,
    } else {
    }
    return
  }
  func.func @transform_0(%arg0: i32, %arg1: i32, %arg2: i32) -> i32 {
    %c0_i32 = arith.constant 0 : i32
    %c0_i32_0 = arith.constant 0 : i32
    return %c0_i32 : i32
  }
  func.func @transform_1(%arg0: i32, %arg1: i32, %arg2: i32) -> (i32, i32) {
    %c0_i32 = arith.constant 0 : i32
    %c0_i32_0 = arith.constant 0 : i32
    return %arg0, %c0_i32 : i32, i32
  }
  func.func @transform_2(%arg0: i32, %arg1: i32, %arg2: i32) -> (i32, i32) {
    %c0_i32 = arith.constant 0 : i32
    %c0_i32_0 = arith.constant 0 : i32
    return %c0_i32, %arg1 : i32, i32
  }
  func.func @transform_3(%arg0: i32, %arg1: i32, %arg2: i32) -> (i32, i32) {
    %c0_i32 = arith.constant 0 : i32
    return %arg0, %arg2 : i32, i32
  }
  func.func @transform_4(%arg0: i32, %arg1: i32, %arg2: i32) -> (i32, i32) {
    %c0_i32 = arith.constant 0 : i32
    return %arg2, %arg1 : i32, i32
  }
  func.func @transform_5(%arg0: i32, %arg1: i32, %arg2: i32) -> (i32, i32) {
    %c0_i32 = arith.constant 0 : i32
    return %arg0, %arg1 : i32, i32
  }
}

</mosaic_0001>

<llo_original>
// kernel: tpu_custom_call.1
$region0: #{tpu_custom_call.1}
  #allocation0 [shape = 'u32[]', space=smem, size = 0x4, offset = 0x4, fixed_abs, tag = 'smem constant byte address 0x4 - core index']
  #allocation1 [shape = 'u32[144,128]{1,0:T(1,128)}', space=vmem, size = 0x12000, scoped, tag = 'internal scratch']
  #allocation2 [shape = 'f32[1]{0:T(128)S(6)}', space=smem, size = 0x200, scoped, tag = 'scoped memory for tpu_custom_call.1']
  %s0 = inlined_call_operand.<no memory space> [shape: f32[1], index: 0, kind: input, shape index: {}]
  %s1 = inlined_call_operand.vmem [shape: f32[16,1], index: 1, kind: input, shape index: {}]
  %s2 = inlined_call_operand.vmem [shape: f32[1,128], index: 2, kind: input, shape index: {}]
  %s3 = inlined_call_operand.vmem [shape: f32[16,128], index: 3, kind: input, shape index: {}]
  %s4 = inlined_call_operand.hbm [shape: f32[128,128], index: 4, kind: input, shape index: {}]
  %s5 = inlined_call_operand.hbm [shape: f32[16,128], index: 5, kind: output, shape index: {}]
  %s6 = sld [smem:[#allocation0]]
  $region42: #{tpu_custom_call.1} parent=0
    _
  %s8 = ssub.s32 1, %s6
  %s9 = scalar_select 0, %s8, %s6
  %10 = sst [smem:[#allocation2]] %s0
  $region1: #{tpu_custom_call.1} parent=0
    #allocation3 [shape = 'u8[65536]{0}', space=vmem, size = 0x10000, scoped, tag = 'input window, operand 4, single buffered']
    #allocation4 [shape = 's32[1]{0}', space=sflag, size = 0x4, scoped, tag = 'scoped memory for tpu_custom_call.1']
    #allocation5 [shape = 's32[1]{0}', space=sflag, size = 0x4, scoped, tag = 'scoped memory for tpu_custom_call.1']
    #allocation6 [shape = 'u8[8192]{0}', space=vmem, size = 0x2000, scoped, tag = 'output window, operand 0, single buffered']
    %11 = vsyncpa [#allocation4], 0
    %12 = vsyncpa [#allocation5], 0
    // Predicated region
    $region2: #{tpu_custom_call.1} parent=1 // pred_check
      _
    $region3: #{tpu_custom_call.1} parent=1 // pred_check_branch
      %14 = sbr.rel (0) target = $region5
    $region4: #{tpu_custom_call.1} parent=1 // pred_region
      _
    $region5: #{tpu_custom_call.1} parent=1 // pred_fallthru
      _
    // Predicated region
    $region6: #{tpu_custom_call.1} parent=1 // pred_check
      _
    $region7: #{tpu_custom_call.1} parent=1 // pred_check_branch
      %16 = sbr.rel (0) target = $region9
    $region8: #{tpu_custom_call.1} parent=1 // pred_region
      _
    $region9: #{tpu_custom_call.1} parent=1 // pred_fallthru
      _
    // Predicated region
    $region10: #{tpu_custom_call.1} parent=1 // pred_check
      _
    $region11: #{tpu_custom_call.1} parent=1 // pred_check_branch
      %18 = sbr.rel (0) target = $region13
    $region12: #{tpu_custom_call.1} parent=1 // pred_region
      _
    $region13: #{tpu_custom_call.1} parent=1 // pred_fallthru
      _
    // Predicated region
    $region14: #{tpu_custom_call.1} parent=1 // pred_check
      _
    $region15: #{tpu_custom_call.1} parent=1 // pred_check_branch
      %20 = sbr.rel (0) target = $region17
    $region16: #{tpu_custom_call.1} parent=1 // pred_region
      _
    $region17: #{tpu_custom_call.1} parent=1 // pred_fallthru
      _
    // Predicated region
    $region18: #{tpu_custom_call.1} parent=1 // pred_check
      _
    $region19: #{tpu_custom_call.1} parent=1 // pred_check_branch
      %22 = sbr.rel (0) target = $region21
    $region20: #{tpu_custom_call.1} parent=1 // pred_region
      %s24 = ssub.s32 2048, 2048
      %25 = vsyncadd [#allocation4], %s24
      %s26 = sshll.u32 [#allocation3], 4
      %s27 = int_to_ptr.vmem [resolvable:$true] %s26
      %32 = dma.hbm_to_vmem [thread:$0]  %s4, 2048, %s27, [#allocation4], 128, 128, 8
    $region21: #{tpu_custom_call.1} parent=1 // pred_fallthru
      _
    // Predicated region
    $region22: #{tpu_custom_call.1} parent=1 // pred_check
      _
    $region23: #{tpu_custom_call.1} parent=1 // pred_check_branch
      %34 = sbr.rel (0) target = $region25
    $region24: #{tpu_custom_call.1} parent=1 // pred_region
      %35 = dma.done [#allocation4], 2048
    $region25: #{tpu_custom_call.1} parent=1 // pred_fallthru
      _
    %p36 = scmp.eq.s32.totalorder 0, 0
    // Predicated region
    $region26: #{tpu_custom_call.1} parent=1 // pred_check
      %p37 = pneg %p36
    $region27: #{tpu_custom_call.1} parent=1 // pred_check_branch
      %39 = sbr.rel (%p37) target = $region29
    $region28: #{tpu_custom_call.1} parent=1 // pred_region
      %40 = vst [vmem:[#allocation6] sm:$0xff] 0.0
      %41 = vst [vmem:[#allocation6 + $0x8] sm:$0xff] 0.0
    $region29: #{tpu_custom_call.1} parent=1 // pred_fallthru
      _
    %v42 = vld [vmem:[#allocation6] sm:$0xff]
    %v43 = vld [vmem:[#allocation6 + $0x8] sm:$0xff]
    %v44 = vld [vmem:[%s3] sm:$0xff]
    %v45 = vld [vmem:[%s3 + $0x8] sm:$0xff]
    %v46 = vld [vmem:[#allocation3] sm:$0xff]
    %v47 = vld [vmem:[#allocation3 + $0x8] sm:$0xff]
    %v48 = vld [vmem:[#allocation3 + $0x10] sm:$0xff]
    %v49 = vld [vmem:[#allocation3 + $0x18] sm:$0xff]
    %v50 = vld [vmem:[#allocation3 + $0x20] sm:$0xff]
    %v51 = vld [vmem:[#allocation3 + $0x28] sm:$0xff]
    %v52 = vld [vmem:[#allocation3 + $0x30] sm:$0xff]
    %v53 = vld [vmem:[#allocation3 + $0x38] sm:$0xff]
    %v54 = vld [vmem:[#allocation3 + $0x40] sm:$0xff]
    %v55 = vld [vmem:[#allocation3 + $0x48] sm:$0xff]
    %v56 = vld [vmem:[#allocation3 + $0x50] sm:$0xff]
    %v57 = vld [vmem:[#allocation3 + $0x58] sm:$0xff]
    %v58 = vld [vmem:[#allocation3 + $0x60] sm:$0xff]
    %v59 = vld [vmem:[#allocation3 + $0x68] sm:$0xff]
    %v60 = vld [vmem:[#allocation3 + $0x70] sm:$0xff]
    %v61 = vld [vmem:[#allocation3 + $0x78] sm:$0xff]
    %62 = vmatprep.subr.mxu0 0.0
    %63 = vmatpush1.msra.mxu0 %v46
    %64 = vmatprep.subr.mxu0 0.0
    %65 = vmatpush1.msra.mxu0 %v47
    %66 = vmatprep.subr.mxu0 0.0
    %67 = vmatpush1.msra.mxu0 %v48
    %68 = vmatprep.subr.mxu0 0.0
    %69 = vmatpush1.msra.mxu0 %v49
    %70 = vmatprep.subr.mxu0 0.0
    %71 = vmatpush1.msra.mxu0 %v50
    %72 = vmatprep.subr.mxu0 0.0
    %73 = vmatpush1.msra.mxu0 %v51
    %74 = vmatprep.subr.mxu0 0.0
    %75 = vmatpush1.msra.mxu0 %v52
    %76 = vmatprep.subr.mxu0 0.0
    %77 = vmatpush1.msra.mxu0 %v53
    %78 = vmatprep.subr.mxu0 0.0
    %79 = vmatpush1.msra.mxu0 %v54
    %80 = vmatprep.subr.mxu0 0.0
    %81 = vmatpush1.msra.mxu0 %v55
    %82 = vmatprep.subr.mxu0 0.0
    %83 = vmatpush1.msra.mxu0 %v56
    %84 = vmatprep.subr.mxu0 0.0
    %85 = vmatpush1.msra.mxu0 %v57
    %86 = vmatprep.subr.mxu0 0.0
    %87 = vmatpush1.msra.mxu0 %v58
    %88 = vmatprep.subr.mxu0 0.0
    %89 = vmatpush1.msra.mxu0 %v59
    %90 = vmatprep.subr.mxu0 0.0
    %91 = vmatpush1.msra.mxu0 %v60
    %92 = vmatprep.subr.mxu0 0.0
    %93 = vmatpush1.msra.mxu0 %v61
    %94 = vmatprep.subr.mxu0 0.0
    %95 = vmatpush1.msra.mxu0 0.0
    %96 = vmatprep.subr.mxu0 0.0
    %97 = vmatpush1.msra.mxu0 0.0
    %98 = vmatprep.subr.mxu0 0.0
    %99 = vmatpush1.msra.mxu0 0.0
    %100 = vmatprep.subr.mxu0 0.0
    %101 = vmatpush1.msra.mxu0 0.0
    %102 = vmatprep.subr.mxu0 0.0
    %103 = vmatpush1.msra.mxu0 0.0
    %104 = vmatprep.subr.mxu0 0.0
    %105 = vmatpush1.msra.mxu0 0.0
    %106 = vmatprep.subr.mxu0 0.0
    %107 = vmatpush1.msra.mxu0 0.0
    %108 = vmatprep.subr.mxu0 0.0
    %109 = vmatpush1.msra.mxu0 0.0
    %110 = vmatprep.subr.mxu0 0.0
    %111 = vmatpush1.msra.mxu0 0.0
    %112 = vmatprep.subr.mxu0 0.0
    %113 = vmatpush1.msra.mxu0 0.0
    %114 = vmatprep.subr.mxu0 0.0
    %115 = vmatpush1.msra.mxu0 0.0
    %116 = vmatprep.subr.mxu0 0.0
    %117 = vmatpush1.msra.mxu0 0.0
    %118 = vmatprep.subr.mxu0 0.0
    %119 = vmatpush1.msra.mxu0 0.0
    %120 = vmatprep.subr.mxu0 0.0
    %121 = vmatpush1.msra.mxu0 0.0
    %122 = vmatprep.subr.mxu0 0.0
    %123 = vmatpush1.msra.mxu0 0.0
    %124 = vmatprep.subr.mxu0 0.0
    %125 = vmatpush1.msra.mxu0 0.0
    %126 = vmatprep.mubr.f32.mxu0 0.0
    %127 = vmatmul.mubr.f32.gmra.mrb[0].mxu0 %v44
    %v128 = vpop.f32.mrb[0].mxu0
    %v129 = vadd.f32 0.0, %v128
    %v130 = vpop.f32.mrb[0].mxu0
    %131 = vmatprep.mubr.f32.mxu0 0.0
    %132 = vmatmul.mubr.f32.gmra.mrb[0].mxu0 %v45
    %v133 = vpop.f32.mrb[0].mxu0
    %v134 = vadd.f32 0.0, %v133
    %v135 = vpop.f32.mrb[0].mxu0
    %136 = vdwg.mxu0
    %v137 = vadd.f32 %v42, %v129
    %v138 = vadd.f32 %v43, %v134
    %139 = vst [vmem:[#allocation6] sm:$0xff] %v137
    %140 = vst [vmem:[#allocation6 + $0x8] sm:$0xff] %v138
    // Predicated region
    $region30: #{tpu_custom_call.1} parent=1 // pred_check
      %p141 = pneg %p36
    $region31: #{tpu_custom_call.1} parent=1 // pred_check_branch
      %143 = sbr.rel (%p141) target = $region33
    $region32: #{tpu_custom_call.1} parent=1 // pred_region
      %v144 = vld [vmem:[%s1] sm:$0xff]
      %v145 = vld [vmem:[%s1 + $0x8] sm:$0xff]
      %v146 = vld [vmem:[%s2] sm:$0x1]
      %148 = vset.pattern.permute.xlu0 0
      %149 = vperm.xlu0 %148, %v144
      %v150 = vpop.permute.xlu0 %149
      %153 = vset.pattern.permute.xlu0 0
      %154 = vperm.xlu0 %153, %v145
      %v155 = vpop.permute.xlu0 %154
      %v158 = vlaneseq
      %v159 = vshrl.u32 %v158, 7
      %v160 = vsub.s32 0, %v159
      %v161 = vrot.slane %v146, %v160
      %v163 = vadd.f32 %v150, %v161
      %v164 = vadd.f32 %v155, %v161
      %v165 = vld [vmem:[#allocation6] sm:$0xff]
      %v166 = vld [vmem:[#allocation6 + $0x8] sm:$0xff]
      %v167 = vmul.f32 %v165, 2.0
      %v168 = vmul.f32 %v166, 2.0
      %v169 = vsub.f32 %v163, %v167
      %v170 = vsub.f32 %v164, %v168
      %v171 = vmax.f32 %v169, 0.0
      %v172 = vmax.f32 %v170, 0.0
      %s173 = sld [smem:[#allocation2]]
      %s174 = ssub.f32 0.0, %s173
      %v175 = vstv %s174
      %v176 = vmul.f32 %v175, %v171
      %v177 = vmul.f32 %v175, %v172
      %v178 = vmul.f32 %v176, 1.442695
      %v179 = vpow.pop %v178
      %v180 = vmul.f32 %v177, 1.442695
      %v181 = vpow.pop %v180
      %182 = vst [vmem:[#allocation6] sm:$0xff] %v179
      %183 = vst [vmem:[#allocation6 + $0x8] sm:$0xff] %v181
    $region33: #{tpu_custom_call.1} parent=1 // pred_fallthru
      _
    // Predicated region
    $region34: #{tpu_custom_call.1} parent=1 // pred_check
      _
    $region35: #{tpu_custom_call.1} parent=1 // pred_check_branch
      %185 = sbr.rel (0) target = $region37
    $region36: #{tpu_custom_call.1} parent=1 // pred_region
      %s187 = ssub.s32 256, 256
      %188 = vsyncadd [#allocation5], %s187
      %s189 = sshll.u32 [#allocation6], 4
      %s190 = int_to_ptr.vmem [resolvable:$true] %s189
      %195 = dma.vmem_to_hbm [thread:$0]  %s190, 256, %s5, [#allocation5], 128, 128, 8
    $region37: #{tpu_custom_call.1} parent=1 // pred_fallthru
      _
    // Predicated region
    $region38: #{tpu_custom_call.1} parent=1 // pred_check
      _
    $region39: #{tpu_custom_call.1} parent=1 // pred_check_branch
      %197 = sbr.rel (0) target = $region41
    $region40: #{tpu_custom_call.1} parent=1 // pred_region
      %198 = dma.done [#allocation5], 256
    $region41: #{tpu_custom_call.1} parent=1 // pred_fallthru
      _
    %199 = vsyncpa [#allocation4], 1
    %200 = vsyncpa [#allocation5], 1

</llo_original>
